<compile_context>
chip_gen: v6e
topology: v6e:2x2x1
jax: 0.10.0
libtpu: 0.0.40
codegen_flags: <defaults>
</compile_context>

<pallas_src>
import logging

import jax
import jax.numpy as jnp
import numpy as np
from jax.experimental import pallas as pl
from jax.experimental.pallas import tpu as pltpu


# ----------------------------------------------------------------------------
# Per-generation tuning.
# ----------------------------------------------------------------------------
def _chip_config():
    """Returns (target_block_bytes, vmem_limit_bytes or None) per TPU gen."""
    kind = ""
    try:
        kind = jax.devices()[0].device_kind.lower()
    except Exception:  # pragma: no cover - be robust on exotic backends
        pass
    if "v7" in kind:
        # 64 MiB physical VMEM/TC, ~1.6 TB/s HBM/TC: 4 MiB blocks keep the
        # ~0.35 us/step pipeline tax at a few %; 4 buffers (in+out x double
        # buffer) = 16 MiB, well inside an explicit 40 MiB scoped limit.
        return 4 * 1024 * 1024, 40 << 20
    if "v6" in kind:
        # 128 MiB physical VMEM; 4 MiB blocks x 4 buffers = 16 MiB, raise the
        # scoped limit explicitly for headroom.
        return 4 * 1024 * 1024, 48 << 20
    # v5e (16 MiB scoped default) and unknown chips: 2 MiB blocks -> 8 MiB
    # total double-buffered footprint fits the default scoped limit.
    return 2 * 1024 * 1024, None


def _sublane_multiple(dtype) -> int:
    """Sublane packing multiple: 8 for 4-byte, 16 for 2-byte, 32 for 1-byte."""
    # TODO(synk): sub-byte dtypes (int4/fp4) would need a different rule.
    itemsize = max(1, jnp.dtype(dtype).itemsize)
    return max(8, 32 // itemsize)


# ----------------------------------------------------------------------------
# Kernel 1: whole-array HBM->HBM DMA identity (no VMEM staging).
# ----------------------------------------------------------------------------
def _dma_identity_kernel(x_hbm_ref, o_hbm_ref, sem):
    copy = pltpu.make_async_copy(x_hbm_ref, o_hbm_ref, sem)
    copy.start()
    copy.wait()


def _dma_identity(x: jax.Array) -> jax.Array:
    """Single HBM->HBM DMA copy of the whole array (any shape / dtype)."""
    return pl.pallas_call(
        _dma_identity_kernel,
        out_shape=jax.ShapeDtypeStruct(x.shape, x.dtype),
        in_specs=[pl.BlockSpec(memory_space=pl.ANY)],
        out_specs=pl.BlockSpec(memory_space=pl.ANY),
        scratch_shapes=[pltpu.SemaphoreType.DMA],
    )(x)


# ----------------------------------------------------------------------------
# Kernel 2: tiled lane-dense elementwise template (identity body here).
# ----------------------------------------------------------------------------
def _copy_kernel(x_ref, o_ref):
    # Subclasses with real forward math would replace this RHS; the base class
    # has nothing to compute, so it is a pure load/store.
    o_ref[...] = x_ref[...]


def _tiled_elementwise_2d(slab: jax.Array) -> jax.Array:
    """Pipelined elementwise pass over a (rows, lanes) slab, tiled along rows."""
    rows, lanes = slab.shape
    assert lanes % 128 == 0, "last dim must be lane-dense (multiple of 128)"

    target_bytes, vmem_limit = _chip_config()
    itemsize = jnp.dtype(slab.dtype).itemsize
    sub = _sublane_multiple(slab.dtype)

    # Rows per block so one buffer is ~target_bytes ...
    tile_rows = max(sub, (target_bytes // (lanes * itemsize)) // sub * sub)
    # ... but keep >= ~4 grid steps on mid-size inputs so the BlockSpec
    # pipeline overlaps input/output DMA and v7x megacore sharding engages.
    quarter = max(sub, (rows // 4) // sub * sub)
    tile_rows = min(tile_rows, quarter)
    # Tiny inputs: one full-extent block (exempt from (8,128) divisibility).
    tile_rows = min(tile_rows, rows)

    grid = (pl.cdiv(rows, tile_rows),)  # partial tail block is masked by Pallas
    return pl.pallas_call(
        _copy_kernel,
        out_shape=jax.ShapeDtypeStruct((rows, lanes), slab.dtype),
        grid=grid,
        in_specs=[pl.BlockSpec((tile_rows, lanes), lambda i: (i, 0))],
        out_specs=pl.BlockSpec((tile_rows, lanes), lambda i: (i, 0)),
        compiler_params=pltpu.CompilerParams(
            dimension_semantics=("parallel",),
            vmem_limit_bytes=vmem_limit,
        ),
    )(slab)


# ----------------------------------------------------------------------------
# BaseNet equivalent.
# ----------------------------------------------------------------------------
class BaseNet:
    """Base class for all neural networks (JAX/Pallas port of oodnet.BaseNet)."""

    def __init__(self):
        self.logger = logging.getLogger(self.__class__.__name__)
        self.rep_dim = None
        # Base class owns no parameters; subclasses populate this dict.
        self.params = {}

    # --- abstract forward, exactly like the PyTorch reference --------------
    def forward(self, *inputs):
        """Forward pass logic. :return: Network output"""
        raise NotImplementedError

    # --- identity plumbing: single whole-array DMA ---------------------------
    def _passthrough(self, x: jax.Array) -> jax.Array:
        """Route a tensor through a single HBM->HBM DMA (identity, any shape)."""
        return _dma_identity(x)

    # --- tiled elementwise template subclasses would reuse -------------------
    def _elementwise(self, x: jax.Array) -> jax.Array:
        """Lane-dense, pipelined elementwise pass (identity body here).

        Keeps the native dtype, reshapes (free, contiguous) to a lane-dense
        2-D slab, and never pads or slices in the wrapper: the row tail is
        handled by the cdiv grid's masked boundary block.
        """
        orig_shape = x.shape
        n = int(np.prod(orig_shape)) if x.ndim else 1
        flat = x.reshape(-1)
        itemsize = jnp.dtype(x.dtype).itemsize

        if n % 128 == 0:
            lanes = 512 if n % 512 == 0 else (256 if n % 256 == 0 else 128)
            out = _tiled_elementwise_2d(flat.reshape(n // lanes, lanes))
            return out.reshape(orig_shape)

        if 2 * n * itemsize <= 8 * 1024 * 1024:
            # Small ragged element count: one full-extent (1, n) block (exempt
            # from the (8, 128) rule) -- still no pad / slice copies.
            out = pl.pallas_call(
                _copy_kernel,
                out_shape=jax.ShapeDtypeStruct((1, n), x.dtype),
            )(flat.reshape(1, n))
            return out.reshape(orig_shape)

        # TODO(synk): large inputs whose element count is not a multiple of 128
        # would need a masked-tail elementwise kernel for real subclass math;
        # identity semantics let the base class fall back to the whole-array DMA.
        return _dma_identity(x)

    # --- summary(): trainable-parameter count + repr ------------------------
    def summary(self):
        """Network summary."""
        n_params = int(sum(int(np.prod(p.shape)) for p in self.params.values()))
        self.logger.info("Trainable parameters: {}".format(n_params))
        self.logger.info(self)
        return n_params


# ----------------------------------------------------------------------------
# Demo / smoke test.
# ----------------------------------------------------------------------------
if __name__ == "__main__":
    logging.basicConfig(level=logging.INFO)

    net = BaseNet()
    net.summary()  # 0 trainable parameters, as in the PyTorch base class

    # forward() is abstract — verify it raises, matching the reference.
    raised = False
    try:
        net.forward(jnp.zeros((1,)))
    except NotImplementedError:
        raised = True
    assert raised, "BaseNet.forward must raise NotImplementedError"

    key = jax.random.PRNGKey(0)

    # 1) Primary small NCHW f32 input: whole-array DMA passthrough + template.
    x = jax.random.normal(key, (2, 4, 16, 16), dtype=jnp.float32)
    y = jax.block_until_ready(net._passthrough(x))
    assert y.shape == x.shape and y.dtype == x.dtype
    np.testing.assert_array_equal(np.asarray(y), np.asarray(x))
    yt = jax.block_until_ready(net._elementwise(x))
    np.testing.assert_array_equal(np.asarray(yt), np.asarray(x))

    # 2) Native-dtype path: bf16 stays bf16 through the tiled kernel.
    xb = jax.random.normal(key, (4, 8, 32, 32), dtype=jnp.bfloat16)
    yb = jax.block_until_ready(net._elementwise(xb))
    assert yb.shape == xb.shape and yb.dtype == xb.dtype
    np.testing.assert_array_equal(np.asarray(yb), np.asarray(xb))

    # 3) Ragged element count (3*5*7 = 105): no pad / slice on either path.
    xr = jax.random.normal(key, (3, 5, 7), dtype=jnp.float32)
    yr = jax.block_until_ready(net._passthrough(xr))
    assert yr.shape == xr.shape and yr.dtype == xr.dtype
    np.testing.assert_array_equal(np.asarray(yr), np.asarray(xr))
    yr2 = jax.block_until_ready(net._elementwise(xr))
    np.testing.assert_array_equal(np.asarray(yr2), np.asarray(xr))

    # 4) Large input -> multi-step pipelined grid (f32, 2048x512 slab).
    xl = jax.random.normal(key, (16, 16, 64, 64), dtype=jnp.float32)
    yl = jax.block_until_ready(net._elementwise(xl))
    assert yl.shape == xl.shape and yl.dtype == xl.dtype
    np.testing.assert_array_equal(np.asarray(yl), np.asarray(xl))

    # 5) Rows not a multiple of the tile -> cdiv grid with masked tail block.
    xm = jax.random.normal(key, (5, 3, 64, 128), dtype=jnp.float32)
    ym = jax.block_until_ready(net._elementwise(xm))
    assert ym.shape == xm.shape and ym.dtype == xm.dtype
    np.testing.assert_array_equal(np.asarray(ym), np.asarray(xm))

    print("KERNEL_OK")
</pallas_src>

<mosaic_0001>
module attributes {stable_mosaic.version = 11 : i64} {
  func.func @_dma_identity_kernel(%arg0: memref<2x4x16x16xf32, #tpu.memory_space<any>>, %arg1: memref<2x4x16x16xf32, #tpu.memory_space<any>>, %arg2: memref<!tpu.dma_semaphore, #tpu.memory_space<semaphore_mem>>) attributes {dimension_semantics = [], scalar_prefetch = 0 : i64, scratch_operands = 1 : i64, tpu.core_type = #tpu.core_type<tc>} {
    tpu.enqueue_dma source(%arg0 : memref<2x4x16x16xf32, #tpu.memory_space<any>>) target(%arg1 : memref<2x4x16x16xf32, #tpu.memory_space<any>>) target_semaphore(%arg2 : memref<!tpu.dma_semaphore, #tpu.memory_space<semaphore_mem>>)
    tpu.wait_dma2 semaphore(%arg2 : memref<!tpu.dma_semaphore, #tpu.memory_space<semaphore_mem>>) src(%arg0 : memref<2x4x16x16xf32, #tpu.memory_space<any>>) dst(%arg1 : memref<2x4x16x16xf32, #tpu.memory_space<any>>)
    return
  }
}

</mosaic_0001>

<llo_original>
// kernel: tpu_custom_call.1
$region0: #{tpu_custom_call.1}
  #allocation0 [shape = 'u32[]', space=smem, size = 0x4, offset = 0x4, fixed_abs, tag = 'smem constant byte address 0x4 - core index']
  #allocation1 [shape = 'u32[144,128]{1,0:T(1,128)}', space=vmem, size = 0x12000, scoped, tag = 'internal scratch']
  #allocation2 [shape = 's32[1]{0}', space=sflag, size = 0x4, scoped, tag = 'scratch operand']
  #allocation3 [shape = 's32[]', space=sflag, size = 0x4, offset = 0, fixed_abs, tag = 'sflag constant byte address 0x0 - dummy sync flag']
  #allocation4 [shape = 'u32[0]{0}', space=smem, size = 0, offset = 0, fixed_abs, tag = 'smem constant byte address 0x0 - null']
  %s0 = inlined_call_operand.hbm [shape: f32[2,4,16,16], index: 0, kind: input, shape index: {}]
  %s1 = inlined_call_operand.hbm [shape: f32[2,4,16,16], index: 1, kind: output, shape index: {}]
  %s2 = sld [smem:[#allocation0]]
  $region2: #{tpu_custom_call.1} parent=0
    _
  %s4 = ssub.s32 1, %s2
  %s5 = scalar_select 0, %s4, %s2
  %s7 = sshll.u32 1, 14
  %s8 = sxor.u32 4294967295, %s7
  %12 = dma.general %s0, 2048, %s1, [#allocation2], 131072, [#allocation4], 0, 0
  %s13 = smul.u32 2, 4
  %s14 = smul.u32 %s13, 16
  %s15 = smul.u32 %s14, 1
  %s16 = sshll.u32 %s15, 4
  %17 = dma.done [#allocation2], %s16
  %18 = vsyncmov [#allocation2]
  %s19 = vpop.sfrf %18
  %p20 = scmp.eq.s32.totalorder %s19, 0
  %p21 = pneg %p20
  %23 = shalt.err (%p21)

</llo_original>
